<compile_context>
chip_gen: v7x
topology: tpu7x:2x2x1
jax: 0.10.0
libtpu: 0.0.40
codegen_flags: <defaults>
</compile_context>

<pallas_src>
import functools

import jax
import jax.numpy as jnp
from jax.experimental import pallas as pl
from jax.experimental.pallas import tpu as pltpu


# ----------------------------------------------------------------------------
# helpers
# ----------------------------------------------------------------------------
def _round_up(x, m):
    return ((x + m - 1) // m) * m


def _tile_for(dim, granule, cap, max_overhead=0.25):
    """Pick (tile, padded_dim).

    tile is a multiple of `granule`, <= cap; padded_dim is a multiple of tile.
    Small dims get one full-size tile; large awkward dims are padded up to the
    target tile unless that would waste more than `max_overhead` of the dim.
    """
    d = _round_up(dim, granule)
    if d <= cap:
        return d, d
    t = cap
    while t > granule and (_round_up(d, t) - dim) > max_overhead * dim:
        t //= 2
    t = max(t, granule)
    return t, _round_up(d, t)


@functools.lru_cache(maxsize=1)
def _vmem_limit_bytes():
    """Generation-aware scoped-VMEM budget: ~3/4 of physical VMEM.

    v7x (64 MiB physical) -> 48 MiB; v5e/v6e (128 MiB) -> 96 MiB. Falls back
    to the conservative v7x number if the query is unavailable.
    """
    phys = 64 * 1024 * 1024
    try:
        info = pltpu.get_tpu_info()
        phys = int(getattr(info, "vmem_capacity_bytes", phys) or phys)
    except Exception:
        pass
    return int(min(96 * 1024 * 1024, max(32 * 1024 * 1024, (phys * 3) // 4)))


def _softplus(x):
    # Numerically stable softplus: max(x, 0) + log1p(exp(-|x|)).
    return jnp.maximum(x, 0.0) + jnp.log1p(jnp.exp(-jnp.abs(x)))


# ----------------------------------------------------------------------------
# Kernel 1: softplus(rho)^2 precompute (only used when weight tiles are
# re-streamed across several batch tiles, i.e. grid_i > 1)
# ----------------------------------------------------------------------------
def _softplus_sq_kernel(rho_ref, out_ref):
    sp = _softplus(rho_ref[...])
    out_ref[...] = (sp * sp).astype(out_ref.dtype)


def _softplus_sq(rho, *, out_dtype, block):
    R, C = rho.shape
    br, bc = block
    return pl.pallas_call(
        _softplus_sq_kernel,
        out_shape=jax.ShapeDtypeStruct((R, C), out_dtype),
        grid=(R // br, C // bc),
        in_specs=[pl.BlockSpec((br, bc), lambda i, j: (i, j))],
        out_specs=pl.BlockSpec((br, bc), lambda i, j: (i, j)),
        compiler_params=pltpu.CompilerParams(
            dimension_semantics=("parallel", "parallel"),
            vmem_limit_bytes=_vmem_limit_bytes()),
    )(rho)


# ----------------------------------------------------------------------------
# Kernel 2a: single-pass kernel (whole K resident, no accumulators, no K loop)
# ----------------------------------------------------------------------------
def _bbb_single_pass_kernel(x_ref, wmu_ref, wv_ref, bmu_ref, brho_ref, eps_ref,
                            o_ref, *, fuse_softplus):
    x = x_ref[...]                     # (tm, K_p), f32 or bf16
    wv = wv_ref[...]                   # W_rho (f32) if fused, else W_sigma^2
    if fuse_softplus:
        sp = _softplus(wv)
        wv = (sp * sp).astype(x.dtype)
    act_mu = jnp.dot(x, wmu_ref[...], preferred_element_type=jnp.float32)
    act_var = jnp.dot(x * x, wv, preferred_element_type=jnp.float32)
    b_sp = _softplus(brho_ref[...])    # (1, tn): free EUP filler
    act_mu = act_mu + bmu_ref[...]
    act_var = act_var + b_sp * b_sp + jnp.float32(1e-16)
    o_ref[...] = (act_mu + jnp.sqrt(act_var) * eps_ref[...].astype(jnp.float32)
                  ).astype(o_ref.dtype)


# ----------------------------------------------------------------------------
# Kernel 2b: K-loop kernel (tk < K_p) with two f32 VMEM accumulators
# ----------------------------------------------------------------------------
def _bbb_kloop_kernel(x_ref, wmu_ref, wv_ref, bmu_ref, brho_ref, eps_ref,
                      o_ref, mu_acc, var_acc, *, fuse_softplus):
    k = pl.program_id(2)

    @pl.when(k == 0)
    def _init():
        mu_acc[...] = jnp.zeros_like(mu_acc)
        var_acc[...] = jnp.zeros_like(var_acc)

    x = x_ref[...]
    wv = wv_ref[...]
    if fuse_softplus:
        sp = _softplus(wv)
        wv = (sp * sp).astype(x.dtype)
    mu_acc[...] += jnp.dot(x, wmu_ref[...], preferred_element_type=jnp.float32)
    var_acc[...] += jnp.dot(x * x, wv, preferred_element_type=jnp.float32)

    @pl.when(k == pl.num_programs(2) - 1)
    def _finalize():
        b_sp = _softplus(brho_ref[...])
        act_mu = mu_acc[...] + bmu_ref[...]
        act_var = var_acc[...] + b_sp * b_sp + jnp.float32(1e-16)
        o_ref[...] = (act_mu
                      + jnp.sqrt(act_var) * eps_ref[...].astype(jnp.float32)
                      ).astype(o_ref.dtype)


# ----------------------------------------------------------------------------
# Wrapper
# ----------------------------------------------------------------------------
def bbb_linear(x, W_mu, W_rho, bias_mu, bias_rho, eps, *, use_bf16=True,
               tm_cap=512, tn_cap=512, tk_cap=2048):
    """Pallas implementation of BBBLinear.forward(x, sample=True)."""
    B, Fin = x.shape
    Fout, Fin2 = W_mu.shape
    assert Fin == Fin2 and eps.shape == (B, Fout)

    w_dtype = jnp.bfloat16 if use_bf16 else jnp.float32

    # Tile/pad choices. N/K depend only on the weight shape (cacheable across
    # training steps); M depends on the batch.
    tk, K_p = _tile_for(Fin, 128, tk_cap)
    tn, N_p = _tile_for(Fout, 128, tn_cap)
    tm, B_p = _tile_for(B, 8, tm_cap)
    grid_i, grid_j = B_p // tm, N_p // tn
    if grid_i * grid_j == 1 and B_p >= 256:
        # v7x has 2 TensorCores: make sure both get an output block when the
        # batch is big enough that splitting is essentially free.
        tm = _round_up(B_p // 2, 8)
        B_p = _round_up(B_p, tm)
        grid_i = B_p // tm

    single_k = (tk == K_p)
    fuse_softplus = (grid_i == 1)      # each weight tile consumed exactly once

    # TODO(synk): in a training loop, cache the transposed/padded weights (and
    # W_var when fuse_softplus is False) across steps instead of rebuilding
    # them every call.
    W_mu_t = jnp.pad(W_mu.T, ((0, K_p - Fin), (0, N_p - Fout))).astype(w_dtype)
    W_rho_t = jnp.pad(W_rho.T, ((0, K_p - Fin), (0, N_p - Fout)),
                      constant_values=-40.0).astype(jnp.float32)
    b_mu = jnp.pad(bias_mu, (0, N_p - Fout)).reshape(1, N_p).astype(jnp.float32)
    b_rho = jnp.pad(bias_rho, (0, N_p - Fout),
                    constant_values=-40.0).reshape(1, N_p).astype(jnp.float32)

    x_p = jnp.pad(x, ((0, B_p - B), (0, K_p - Fin))).astype(w_dtype)
    eps_p = jnp.pad(eps, ((0, B_p - B), (0, N_p - Fout))).astype(w_dtype)

    if fuse_softplus:
        w_var_in = W_rho_t             # raw rho (f32); softplus^2 done in-kernel
    else:
        w_var_in = _softplus_sq(W_rho_t, out_dtype=w_dtype, block=(tk, tn))

    if single_k:
        kernel = functools.partial(_bbb_single_pass_kernel,
                                   fuse_softplus=fuse_softplus)
        grid = (grid_i, grid_j)
        in_specs = [
            pl.BlockSpec((tm, K_p), lambda i, j: (i, 0)),    # x
            pl.BlockSpec((K_p, tn), lambda i, j: (0, j)),    # W_mu      (K, N)
            pl.BlockSpec((K_p, tn), lambda i, j: (0, j)),    # W_rho / W_sigma^2
            pl.BlockSpec((1, tn),   lambda i, j: (0, j)),    # bias_mu
            pl.BlockSpec((1, tn),   lambda i, j: (0, j)),    # bias_rho
            pl.BlockSpec((tm, tn),  lambda i, j: (i, j)),    # eps
        ]
        out_specs = pl.BlockSpec((tm, tn), lambda i, j: (i, j))
        scratch = []
        dims = ("parallel", "parallel")
    else:
        kernel = functools.partial(_bbb_kloop_kernel,
                                   fuse_softplus=fuse_softplus)
        grid = (grid_i, grid_j, K_p // tk)
        # NOTE: if DMA-latency bound, pipeline_mode=pl.Buffered(3) on the two
        # weight specs below is a cheap knob to sweep.
        in_specs = [
            pl.BlockSpec((tm, tk), lambda i, j, k: (i, k)),  # x
            pl.BlockSpec((tk, tn), lambda i, j, k: (k, j)),  # W_mu      (K, N)
            pl.BlockSpec((tk, tn), lambda i, j, k: (k, j)),  # W_rho / W_sigma^2
            pl.BlockSpec((1, tn),  lambda i, j, k: (0, j)),  # bias_mu
            pl.BlockSpec((1, tn),  lambda i, j, k: (0, j)),  # bias_rho
            pl.BlockSpec((tm, tn), lambda i, j, k: (i, j)),  # eps
        ]
        out_specs = pl.BlockSpec((tm, tn), lambda i, j, k: (i, j))
        scratch = [pltpu.VMEM((tm, tn), jnp.float32),
                   pltpu.VMEM((tm, tn), jnp.float32)]
        dims = ("parallel", "parallel", "arbitrary")

    out = pl.pallas_call(
        kernel,
        out_shape=jax.ShapeDtypeStruct((B_p, N_p), jnp.float32),
        grid_spec=pltpu.PrefetchScalarGridSpec(
            num_scalar_prefetch=0,
            grid=grid,
            in_specs=in_specs,
            out_specs=out_specs,
            scratch_shapes=scratch),
        compiler_params=pltpu.CompilerParams(
            dimension_semantics=dims,
            vmem_limit_bytes=_vmem_limit_bytes()),
    )(x_p, W_mu_t, w_var_in, b_mu, b_rho, eps_p)

    return out[:B, :Fout]


# ----------------------------------------------------------------------------
# Self-test
# ----------------------------------------------------------------------------
def _reference(x, W_mu, W_rho, bias_mu, bias_rho, eps):
    W_sigma = jnp.log1p(jnp.exp(W_rho))
    bias_sigma = jnp.log1p(jnp.exp(bias_rho))
    act_mu = x @ W_mu.T + bias_mu
    act_var = 1e-16 + (x * x) @ (W_sigma ** 2).T + bias_sigma ** 2
    return act_mu + jnp.sqrt(act_var) * eps


if __name__ == "__main__":
    key = jax.random.PRNGKey(0)

    def make_case(k, B, Fin, Fout):
        k_x, k_w, k_b, k_eps = jax.random.split(k, 4)
        x = jax.random.normal(k_x, (B, Fin), dtype=jnp.float32)
        W_mu = 0.1 * jax.random.normal(k_w, (Fout, Fin), dtype=jnp.float32)
        W_rho = jnp.full((Fout, Fin), -3.0, dtype=jnp.float32)
        bias_mu = 0.1 * jax.random.normal(k_b, (Fout,), dtype=jnp.float32)
        bias_rho = jnp.full((Fout,), -3.0, dtype=jnp.float32)
        eps = jax.random.normal(k_eps, (B, Fout), dtype=jnp.float32)
        return x, W_mu, W_rho, bias_mu, bias_rho, eps

    k1, k2, k3 = jax.random.split(key, 3)

    # Case 1: small layer -> single fully fused pallas_call (grid (1,1),
    # softplus^2 fused, no accumulators). Tight f32 check + loose bf16 check.
    args = make_case(k1, 8, 32, 32)
    ref = _reference(*args)
    out = jax.block_until_ready(bbb_linear(*args, use_bf16=False))
    assert out.shape == ref.shape
    assert jnp.allclose(out, ref, atol=1e-4, rtol=1e-4), "case1 f32 mismatch"
    out_bf16 = jax.block_until_ready(bbb_linear(*args, use_bf16=True))
    assert jnp.allclose(out_bf16, ref, atol=3e-2, rtol=3e-2), "case1 bf16 mismatch"

    # Case 2: small caps force the K-loop accumulator kernel with a
    # precomputed softplus(W_rho)^2 (weight tiles reused across batch tiles).
    args = make_case(k2, 16, 384, 256)
    ref = _reference(*args)
    out = jax.block_until_ready(
        bbb_linear(*args, use_bf16=False, tm_cap=8, tn_cap=128, tk_cap=128))
    assert jnp.allclose(out, ref, atol=1e-3, rtol=1e-3), "case2 f32 mismatch"

    # Case 3: single-pass kernel but grid_i > 1, so softplus^2 goes through
    # the standalone elementwise kernel.
    args = make_case(k3, 32, 64, 64)
    ref = _reference(*args)
    out = jax.block_until_ready(bbb_linear(*args, use_bf16=False, tm_cap=8))
    assert jnp.allclose(out, ref, atol=1e-3, rtol=1e-3), "case3 f32 mismatch"

    print("KERNEL_OK")
</pallas_src>

<mosaic_0001>
module attributes {stable_mosaic.version = 11 : i64} {
  func.func @_bbb_single_pass_kernel(%arg0: i32, %arg1: i32, %arg2: memref<8x128xf32, #tpu.memory_space<vmem>>, %arg3: memref<128x128xf32, #tpu.memory_space<vmem>>, %arg4: memref<128x128xf32, #tpu.memory_space<vmem>>, %arg5: memref<1x128xf32, #tpu.memory_space<vmem>>, %arg6: memref<1x128xf32, #tpu.memory_space<vmem>>, %arg7: memref<8x128xf32, #tpu.memory_space<vmem>>, %arg8: memref<8x128xf32, #tpu.memory_space<vmem>>) attributes {dimension_semantics = [#tpu.dimension_semantics<parallel>, #tpu.dimension_semantics<parallel>], iteration_bounds = array<i64: 1, 1>, scalar_prefetch = 0 : i64, scratch_operands = 0 : i64, tpu.core_type = #tpu.core_type<tc>, window_params = [{transform_indices = @transform_0, window_bounds = array<i64: 8, 128>}, {transform_indices = @transform_1, window_bounds = array<i64: 128, 128>}, {transform_indices = @transform_2, window_bounds = array<i64: 128, 128>}, {transform_indices = @transform_3, window_bounds = array<i64: 1, 128>}, {transform_indices = @transform_4, window_bounds = array<i64: 1, 128>}, {transform_indices = @transform_5, window_bounds = array<i64: 8, 128>}, {transform_indices = @transform_6, window_bounds = array<i64: 8, 128>}]} {
    %c0 = arith.constant 0 : index
    %c0_0 = arith.constant 0 : index
    %0 = vector.load %arg2[%c0, %c0_0] : memref<8x128xf32, #tpu.memory_space<vmem>>, vector<8x128xf32>
    %c0_1 = arith.constant 0 : index
    %c0_2 = arith.constant 0 : index
    %1 = vector.load %arg4[%c0_1, %c0_2] : memref<128x128xf32, #tpu.memory_space<vmem>>, vector<128x128xf32>
    %cst = arith.constant 0.000000e+00 : f32
    %2 = vector.broadcast %cst : f32 to vector<128x128xf32>
    %3 = arith.maximumf %1, %2 : vector<128x128xf32>
    %4 = math.absf %1 : vector<128x128xf32>
    %cst_3 = arith.constant 0.000000e+00 : f32
    %5 = vector.broadcast %cst_3 : f32 to vector<128x128xf32>
    %6 = arith.subf %5, %4 : vector<128x128xf32>
    %7 = math.exp %6 : vector<128x128xf32>
    %8 = math.log1p %7 : vector<128x128xf32>
    %9 = arith.addf %3, %8 : vector<128x128xf32>
    %10 = arith.mulf %9, %9 : vector<128x128xf32>
    %c0_4 = arith.constant 0 : index
    %c0_5 = arith.constant 0 : index
    %11 = vector.load %arg3[%c0_4, %c0_5] : memref<128x128xf32, #tpu.memory_space<vmem>>, vector<128x128xf32>
    %cst_6 = arith.constant dense<0.000000e+00> : vector<8x128xf32>
    %12 = tpu.matmul %0, %11, %cst_6 {dimension_numbers = #tpu.dot_dimension_numbers<[1], [0], [0], [1], [0, 0, 1, 1], [], []>} : vector<8x128xf32>, vector<128x128xf32>, vector<8x128xf32> -> vector<8x128xf32>
    %13 = arith.mulf %0, %0 : vector<8x128xf32>
    %cst_7 = arith.constant dense<0.000000e+00> : vector<8x128xf32>
    %14 = tpu.matmul %13, %10, %cst_7 {dimension_numbers = #tpu.dot_dimension_numbers<[1], [0], [0], [1], [0, 0, 1, 1], [], []>} : vector<8x128xf32>, vector<128x128xf32>, vector<8x128xf32> -> vector<8x128xf32>
    %c0_8 = arith.constant 0 : index
    %c0_9 = arith.constant 0 : index
    %15 = vector.load %arg6[%c0_8, %c0_9] : memref<1x128xf32, #tpu.memory_space<vmem>>, vector<1x128xf32>
    %cst_10 = arith.constant 0.000000e+00 : f32
    %16 = vector.broadcast %cst_10 : f32 to vector<1x128xf32>
    %17 = arith.maximumf %15, %16 : vector<1x128xf32>
    %18 = math.absf %15 : vector<1x128xf32>
    %cst_11 = arith.constant 0.000000e+00 : f32
    %19 = vector.broadcast %cst_11 : f32 to vector<1x128xf32>
    %20 = arith.subf %19, %18 : vector<1x128xf32>
    %21 = math.exp %20 : vector<1x128xf32>
    %22 = math.log1p %21 : vector<1x128xf32>
    %23 = arith.addf %17, %22 : vector<1x128xf32>
    %c0_12 = arith.constant 0 : index
    %c0_13 = arith.constant 0 : index
    %24 = vector.load %arg5[%c0_12, %c0_13] : memref<1x128xf32, #tpu.memory_space<vmem>>, vector<1x128xf32>
    %25 = vector.broadcast %24 : vector<1x128xf32> to vector<8x128xf32>
    %26 = arith.addf %12, %25 : vector<8x128xf32>
    %27 = arith.mulf %23, %23 : vector<1x128xf32>
    %28 = vector.broadcast %27 : vector<1x128xf32> to vector<8x128xf32>
    %29 = arith.addf %14, %28 : vector<8x128xf32>
    %cst_14 = arith.constant 1.000000e-16 : f32
    %30 = vector.broadcast %cst_14 : f32 to vector<8x128xf32>
    %31 = arith.addf %29, %30 : vector<8x128xf32>
    %32 = math.sqrt %31 : vector<8x128xf32>
    %c0_15 = arith.constant 0 : index
    %c0_16 = arith.constant 0 : index
    %33 = vector.load %arg7[%c0_15, %c0_16] : memref<8x128xf32, #tpu.memory_space<vmem>>, vector<8x128xf32>
    %34 = arith.mulf %32, %33 : vector<8x128xf32>
    %35 = arith.addf %26, %34 : vector<8x128xf32>
    %c0_17 = arith.constant 0 : index
    %c0_18 = arith.constant 0 : index
    %36 = vector.load %arg8[%c0_17, %c0_18] : memref<8x128xf32, #tpu.memory_space<vmem>>, vector<8x128xf32>
    tpu.vector_store %arg8[%c0_17, %c0_18], %35 {strides = array<i32>} : memref<8x128xf32, #tpu.memory_space<vmem>>, vector<8x128xf32>,
    return
  }
  func.func @transform_0(%arg0: i32, %arg1: i32) -> (i32, i32) {
    %c0_i32 = arith.constant 0 : i32
    %c0_i32_0 = arith.constant 0 : i32
    return %arg0, %c0_i32 : i32, i32
  }
  func.func @transform_1(%arg0: i32, %arg1: i32) -> (i32, i32) {
    %c0_i32 = arith.constant 0 : i32
    %c0_i32_0 = arith.constant 0 : i32
    return %c0_i32, %arg1 : i32, i32
  }
  func.func @transform_2(%arg0: i32, %arg1: i32) -> (i32, i32) {
    %c0_i32 = arith.constant 0 : i32
    %c0_i32_0 = arith.constant 0 : i32
    return %c0_i32, %arg1 : i32, i32
  }
  func.func @transform_3(%arg0: i32, %arg1: i32) -> (i32, i32) {
    %c0_i32 = arith.constant 0 : i32
    %c0_i32_0 = arith.constant 0 : i32
    return %c0_i32, %arg1 : i32, i32
  }
  func.func @transform_4(%arg0: i32, %arg1: i32) -> (i32, i32) {
    %c0_i32 = arith.constant 0 : i32
    %c0_i32_0 = arith.constant 0 : i32
    return %c0_i32, %arg1 : i32, i32
  }
  func.func @transform_5(%arg0: i32, %arg1: i32) -> (i32, i32) {
    %c0_i32 = arith.constant 0 : i32
    return %arg0, %arg1 : i32, i32
  }
  func.func @transform_6(%arg0: i32, %arg1: i32) -> (i32, i32) {
    %c0_i32 = arith.constant 0 : i32
    return %arg0, %arg1 : i32, i32
  }
}

</mosaic_0001>

<llo_original>
// kernel: tpu_custom_call.1
$region0: #{tpu_custom_call.1}
  #allocation0 [shape = 'u32[]', space=smem, size = 0x4, offset = 0x4, fixed_abs, tag = 'smem constant byte address 0x4 - core index']
  #allocation1 [shape = 'u32[144,128]{1,0:T(1,128)}', space=vmem, size = 0x12000, scoped, tag = 'internal scratch']
  %s0 = inlined_call_operand.hbm [shape: f32[8,128], index: 0, kind: input, shape index: {}]
  %s1 = inlined_call_operand.hbm [shape: f32[128,128], index: 1, kind: input, shape index: {}]
  %s2 = inlined_call_operand.hbm [shape: f32[128,128], index: 2, kind: input, shape index: {}]
  %s3 = inlined_call_operand.vmem [shape: f32[1,128], index: 3, kind: input, shape index: {}]
  %s4 = inlined_call_operand.vmem [shape: f32[1,128], index: 4, kind: input, shape index: {}]
  %s5 = inlined_call_operand.vmem [shape: f32[8,128], index: 5, kind: input, shape index: {}]
  %s6 = inlined_call_operand.hbm [shape: f32[8,128], index: 6, kind: output, shape index: {}]
  %s7 = sld [smem:[#allocation0]]
  $region46: #{tpu_custom_call.1} parent=0
    _
  %s9 = ssub.s32 1, %s7
  %s10 = scalar_select 0, %s9, %s7
  $region1: #{tpu_custom_call.1} parent=0
    #allocation2 [shape = 'u8[4096]{0}', space=vmem, size = 0x1000, scoped, tag = 'input window, operand 0, single buffered']
    #allocation3 [shape = 's32[1]{0}', space=sflag, size = 0x4, scoped, tag = 'scoped memory for tpu_custom_call.1']
    #allocation4 [shape = 's32[1]{0}', space=sflag, size = 0x4, scoped, tag = 'scoped memory for tpu_custom_call.1']
    #allocation5 [shape = 'u8[65536]{0}', space=vmem, size = 0x10000, scoped, tag = 'input window, operand 1, single buffered']
    #allocation6 [shape = 's32[1]{0}', space=sflag, size = 0x4, scoped, tag = 'scoped memory for tpu_custom_call.1']
    #allocation7 [shape = 'u8[65536]{0}', space=vmem, size = 0x10000, scoped, tag = 'input window, operand 2, single buffered']
    #allocation8 [shape = 'u8[4096]{0}', space=vmem, size = 0x1000, scoped, tag = 'output window, operand 0, single buffered']
    %11 = vsyncpa [#allocation3], 0
    %12 = vsyncpa [#allocation6], 0
    %13 = vsyncpa [#allocation4], 0
    // Predicated region
    $region2: #{tpu_custom_call.1} parent=1 // pred_check
      _
    $region3: #{tpu_custom_call.1} parent=1 // pred_check_branch
      %15 = sbr.rel (0) target = $region5
    $region4: #{tpu_custom_call.1} parent=1 // pred_region
      %s17 = ssub.s32 128, 128
      %18 = vsyncadd [#allocation3], %s17
      %s20 = sshll.u32 [#allocation2], 4
      %s21 = int_to_ptr.vmem [resolvable:$true] %s20
      %23 = dma.hbm_to_vmem [thread:$0]  %s0, 128, %s21, [#allocation3]
    $region5: #{tpu_custom_call.1} parent=1 // pred_fallthru
      _
    // Predicated region
    $region6: #{tpu_custom_call.1} parent=1 // pred_check
      _
    $region7: #{tpu_custom_call.1} parent=1 // pred_check_branch
      %25 = sbr.rel (0) target = $region9
    $region8: #{tpu_custom_call.1} parent=1 // pred_region
      %s27 = ssub.s32 2048, 2048
      %28 = vsyncadd [#allocation6], %s27
      %s29 = sshll.u32 [#allocation5], 4
      %s30 = int_to_ptr.vmem [resolvable:$true] %s29
      %35 = dma.hbm_to_vmem [thread:$0]  %s1, 2048, %s30, [#allocation6], 128, 128, 8
    $region9: #{tpu_custom_call.1} parent=1 // pred_fallthru
      _
    // Predicated region
    $region10: #{tpu_custom_call.1} parent=1 // pred_check
      _
    $region11: #{tpu_custom_call.1} parent=1 // pred_check_branch
      %37 = sbr.rel (0) target = $region13
    $region12: #{tpu_custom_call.1} parent=1 // pred_region
      %s39 = ssub.s32 2048, 2048
      %40 = vsyncadd [#allocation6], %s39
      %s41 = sshll.u32 [#allocation7], 4
      %s42 = int_to_ptr.vmem [resolvable:$true] %s41
      %47 = dma.hbm_to_vmem [thread:$0]  %s2, 2048, %s42, [#allocation6], 128, 128, 8
    $region13: #{tpu_custom_call.1} parent=1 // pred_fallthru
      _
    // Predicated region
    $region14: #{tpu_custom_call.1} parent=1 // pred_check
      _
    $region15: #{tpu_custom_call.1} parent=1 // pred_check_branch
      %49 = sbr.rel (0) target = $region17
    $region16: #{tpu_custom_call.1} parent=1 // pred_region
      _
    $region17: #{tpu_custom_call.1} parent=1 // pred_fallthru
      _
    // Predicated region
    $region18: #{tpu_custom_call.1} parent=1 // pred_check
      _
    $region19: #{tpu_custom_call.1} parent=1 // pred_check_branch
      %51 = sbr.rel (0) target = $region21
    $region20: #{tpu_custom_call.1} parent=1 // pred_region
      _
    $region21: #{tpu_custom_call.1} parent=1 // pred_fallthru
      _
    // Predicated region
    $region22: #{tpu_custom_call.1} parent=1 // pred_check
      _
    $region23: #{tpu_custom_call.1} parent=1 // pred_check_branch
      %53 = sbr.rel (0) target = $region25
    $region24: #{tpu_custom_call.1} parent=1 // pred_region
      _
    $region25: #{tpu_custom_call.1} parent=1 // pred_fallthru
      _
    // Predicated region
    $region26: #{tpu_custom_call.1} parent=1 // pred_check
      _
    $region27: #{tpu_custom_call.1} parent=1 // pred_check_branch
      %55 = sbr.rel (0) target = $region29
    $region28: #{tpu_custom_call.1} parent=1 // pred_region
      %56 = dma.done [#allocation3], 128
    $region29: #{tpu_custom_call.1} parent=1 // pred_fallthru
      _
    // Predicated region
    $region30: #{tpu_custom_call.1} parent=1 // pred_check
      _
    $region31: #{tpu_custom_call.1} parent=1 // pred_check_branch
      %58 = sbr.rel (0) target = $region33
    $region32: #{tpu_custom_call.1} parent=1 // pred_region
      %59 = dma.done [#allocation6], 2048
    $region33: #{tpu_custom_call.1} parent=1 // pred_fallthru
      _
    // Predicated region
    $region34: #{tpu_custom_call.1} parent=1 // pred_check
      _
    $region35: #{tpu_custom_call.1} parent=1 // pred_check_branch
      %61 = sbr.rel (0) target = $region37
    $region36: #{tpu_custom_call.1} parent=1 // pred_region
      %62 = dma.done [#allocation6], 2048
    $region37: #{tpu_custom_call.1} parent=1 // pred_fallthru
      _
    %v63 = vld [vmem:[#allocation2] sm:$0xff]
    %v64 = vld [vmem:[#allocation7] sm:$0xff]
    %v65 = vld [vmem:[#allocation7 + $0x8] sm:$0xff]
    %v66 = vld [vmem:[#allocation7 + $0x10] sm:$0xff]
    %v67 = vld [vmem:[#allocation7 + $0x18] sm:$0xff]
    %v68 = vld [vmem:[#allocation7 + $0x20] sm:$0xff]
    %v69 = vld [vmem:[#allocation7 + $0x28] sm:$0xff]
    %v70 = vld [vmem:[#allocation7 + $0x30] sm:$0xff]
    %v71 = vld [vmem:[#allocation7 + $0x38] sm:$0xff]
    %v72 = vld [vmem:[#allocation7 + $0x40] sm:$0xff]
    %v73 = vld [vmem:[#allocation7 + $0x48] sm:$0xff]
    %v74 = vld [vmem:[#allocation7 + $0x50] sm:$0xff]
    %v75 = vld [vmem:[#allocation7 + $0x58] sm:$0xff]
    %v76 = vld [vmem:[#allocation7 + $0x60] sm:$0xff]
    %v77 = vld [vmem:[#allocation7 + $0x68] sm:$0xff]
    %v78 = vld [vmem:[#allocation7 + $0x70] sm:$0xff]
    %v79 = vld [vmem:[#allocation7 + $0x78] sm:$0xff]
    %v80 = vmax.f32 %v64, 0.0
    %v81 = vmax.f32 %v65, 0.0
    %v82 = vmax.f32 %v66, 0.0
    %v83 = vmax.f32 %v67, 0.0
    %v84 = vmax.f32 %v68, 0.0
    %v85 = vmax.f32 %v69, 0.0
    %v86 = vmax.f32 %v70, 0.0
    %v87 = vmax.f32 %v71, 0.0
    %v88 = vmax.f32 %v72, 0.0
    %v89 = vmax.f32 %v73, 0.0
    %v90 = vmax.f32 %v74, 0.0
    %v91 = vmax.f32 %v75, 0.0
    %v92 = vmax.f32 %v76, 0.0
    %v93 = vmax.f32 %v77, 0.0
    %v94 = vmax.f32 %v78, 0.0
    %v95 = vmax.f32 %v79, 0.0
    %v96 = vand.u32 2147483647, %v64
    %v97 = vand.u32 2147483647, %v65
    %v98 = vand.u32 2147483647, %v66
    %v99 = vand.u32 2147483647, %v67
    %v100 = vand.u32 2147483647, %v68
    %v101 = vand.u32 2147483647, %v69
    %v102 = vand.u32 2147483647, %v70
    %v103 = vand.u32 2147483647, %v71
    %v104 = vand.u32 2147483647, %v72
    %v105 = vand.u32 2147483647, %v73
    %v106 = vand.u32 2147483647, %v74
    %v107 = vand.u32 2147483647, %v75
    %v108 = vand.u32 2147483647, %v76
    %v109 = vand.u32 2147483647, %v77
    %v110 = vand.u32 2147483647, %v78
    %v111 = vand.u32 2147483647, %v79
    %v112 = vsub.f32 0.0, %v96
    %v113 = vsub.f32 0.0, %v97
    %v114 = vsub.f32 0.0, %v98
    %v115 = vsub.f32 0.0, %v99
    %v116 = vsub.f32 0.0, %v100
    %v117 = vsub.f32 0.0, %v101
    %v118 = vsub.f32 0.0, %v102
    %v119 = vsub.f32 0.0, %v103
    %v120 = vsub.f32 0.0, %v104
    %v121 = vsub.f32 0.0, %v105
    %v122 = vsub.f32 0.0, %v106
    %v123 = vsub.f32 0.0, %v107
    %v124 = vsub.f32 0.0, %v108
    %v125 = vsub.f32 0.0, %v109
    %v126 = vsub.f32 0.0, %v110
    %v127 = vsub.f32 0.0, %v111
    %v128 = vmul.f32 %v112, 1.442695
    %v129 = vpow.pop %v128
    %v130 = vmul.f32 %v113, 1.442695
    %v131 = vpow.pop %v130
    %v132 = vmul.f32 %v114, 1.442695
    %v133 = vpow.pop %v132
    %v134 = vmul.f32 %v115, 1.442695
    %v135 = vpow.pop %v134
    %v136 = vmul.f32 %v116, 1.442695
    %v137 = vpow.pop %v136
    %v138 = vmul.f32 %v117, 1.442695
    %v139 = vpow.pop %v138
    %v140 = vmul.f32 %v118, 1.442695
    %v141 = vpow.pop %v140
    %v142 = vmul.f32 %v119, 1.442695
    %v143 = vpow.pop %v142
    %v144 = vmul.f32 %v120, 1.442695
    %v145 = vpow.pop %v144
    %v146 = vmul.f32 %v121, 1.442695
    %v147 = vpow.pop %v146
    %v148 = vmul.f32 %v122, 1.442695
    %v149 = vpow.pop %v148
    %v150 = vmul.f32 %v123, 1.442695
    %v151 = vpow.pop %v150
    %v152 = vmul.f32 %v124, 1.442695
    %v153 = vpow.pop %v152
    %v154 = vmul.f32 %v125, 1.442695
    %v155 = vpow.pop %v154
    %v156 = vmul.f32 %v126, 1.442695
    %v157 = vpow.pop %v156
    %v158 = vmul.f32 %v127, 1.442695
    %v159 = vpow.pop %v158
    %v160 = vadd.f32 %v129, 1.0
    %v161 = vlog2.pop %v160
    %v162 = vmul.f32 %v161, 0.6931472
    %v163 = vmul.f32 -0.5, %v129
    %v164 = vadd.f32 %v163, 1.0
    %v165 = vmul.f32 %v164, %v129
    %v166 = vand.u32 2147483647, %v129
    %vm167 = vcmp.lt.f32.partialorder %v166, 0.0004427343
    %v168 = vsel %vm167, %v165, %v162
    %v169 = vadd.f32 %v131, 1.0
    %v170 = vlog2.pop %v169
    %v171 = vmul.f32 %v170, 0.6931472
    %v172 = vmul.f32 -0.5, %v131
    %v173 = vadd.f32 %v172, 1.0
    %v174 = vmul.f32 %v173, %v131
    %v175 = vand.u32 2147483647, %v131
    %vm176 = vcmp.lt.f32.partialorder %v175, 0.0004427343
    %v177 = vsel %vm176, %v174, %v171
    %v178 = vadd.f32 %v133, 1.0
    %v179 = vlog2.pop %v178
    %v180 = vmul.f32 %v179, 0.6931472
    %v181 = vmul.f32 -0.5, %v133
    %v182 = vadd.f32 %v181, 1.0
    %v183 = vmul.f32 %v182, %v133
    %v184 = vand.u32 2147483647, %v133
    %vm185 = vcmp.lt.f32.partialorder %v184, 0.0004427343
    %v186 = vsel %vm185, %v183, %v180
    %v187 = vadd.f32 %v135, 1.0
    %v188 = vlog2.pop %v187
    %v189 = vmul.f32 %v188, 0.6931472
    %v190 = vmul.f32 -0.5, %v135
    %v191 = vadd.f32 %v190, 1.0
    %v192 = vmul.f32 %v191, %v135
    %v193 = vand.u32 2147483647, %v135
    %vm194 = vcmp.lt.f32.partialorder %v193, 0.0004427343
    %v195 = vsel %vm194, %v192, %v189
    %v196 = vadd.f32 %v137, 1.0
    %v197 = vlog2.pop %v196
    %v198 = vmul.f32 %v197, 0.6931472
    %v199 = vmul.f32 -0.5, %v137
    %v200 = vadd.f32 %v199, 1.0
    %v201 = vmul.f32 %v200, %v137
    %v202 = vand.u32 2147483647, %v137
    %vm203 = vcmp.lt.f32.partialorder %v202, 0.0004427343
    %v204 = vsel %vm203, %v201, %v198
    %v205 = vadd.f32 %v139, 1.0
    %v206 = vlog2.pop %v205
    %v207 = vmul.f32 %v206, 0.6931472
    %v208 = vmul.f32 -0.5, %v139
    %v209 = vadd.f32 %v208, 1.0
    %v210 = vmul.f32 %v209, %v139
    %v211 = vand.u32 2147483647, %v139
    %vm212 = vcmp.lt.f32.partialorder %v211, 0.0004427343
    %v213 = vsel %vm212, %v210, %v207
    %v214 = vadd.f32 %v141, 1.0
    %v215 = vlog2.pop %v214
    %v216 = vmul.f32 %v215, 0.6931472
    %v217 = vmul.f32 -0.5, %v141
    %v218 = vadd.f32 %v217, 1.0
    %v219 = vmul.f32 %v218, %v141
    %v220 = vand.u32 2147483647, %v141
    %vm221 = vcmp.lt.f32.partialorder %v220, 0.0004427343
    %v222 = vsel %vm221, %v219, %v216
    %v223 = vadd.f32 %v143, 1.0
    %v224 = vlog2.pop %v223
    %v225 = vmul.f32 %v224, 0.6931472
    %v226 = vmul.f32 -0.5, %v143
    %v227 = vadd.f32 %v226, 1.0
    %v228 = vmul.f32 %v227, %v143
    %v229 = vand.u32 2147483647, %v143
    %vm230 = vcmp.lt.f32.partialorder %v229, 0.0004427343
    %v231 = vsel %vm230, %v228, %v225
    %v232 = vadd.f32 %v145, 1.0
    %v233 = vlog2.pop %v232
    %v234 = vmul.f32 %v233, 0.6931472
    %v235 = vmul.f32 -0.5, %v145
    %v236 = vadd.f32 %v235, 1.0
    %v237 = vmul.f32 %v236, %v145
    %v238 = vand.u32 2147483647, %v145
    %vm239 = vcmp.lt.f32.partialorder %v238, 0.0004427343
    %v240 = vsel %vm239, %v237, %v234
    %v241 = vadd.f32 %v147, 1.0
    %v242 = vlog2.pop %v241
    %v243 = vmul.f32 %v242, 0.6931472
    %v244 = vmul.f32 -0.5, %v147
    %v245 = vadd.f32 %v244, 1.0
    %v246 = vmul.f32 %v245, %v147
    %v247 = vand.u32 2147483647, %v147
    %vm248 = vcmp.lt.f32.partialorder %v247, 0.0004427343
    %v249 = vsel %vm248, %v246, %v243
    %v250 = vadd.f32 %v149, 1.0
    %v251 = vlog2.pop %v250
    %v252 = vmul.f32 %v251, 0.6931472
    %v253 = vmul.f32 -0.5, %v149
    %v254 = vadd.f32 %v253, 1.0
    %v255 = vmul.f32 %v254, %v149
    %v256 = vand.u32 2147483647, %v149
    %vm257 = vcmp.lt.f32.partialorder %v256, 0.0004427343
    %v258 = vsel %vm257, %v255, %v252
    %v259 = vadd.f32 %v151, 1.0
    %v260 = vlog2.pop %v259
    %v261 = vmul.f32 %v260, 0.6931472
    %v262 = vmul.f32 -0.5, %v151
    %v263 = vadd.f32 %v262, 1.0
    %v264 = vmul.f32 %v263, %v151
    %v265 = vand.u32 2147483647, %v151
    %vm266 = vcmp.lt.f32.partialorder %v265, 0.0004427343
    %v267 = vsel %vm266, %v264, %v261
    %v268 = vadd.f32 %v153, 1.0
    %v269 = vlog2.pop %v268
    %v270 = vmul.f32 %v269, 0.6931472
    %v271 = vmul.f32 -0.5, %v153
    %v272 = vadd.f32 %v271, 1.0
    %v273 = vmul.f32 %v272, %v153
    %v274 = vand.u32 2147483647, %v153
    %vm275 = vcmp.lt.f32.partialorder %v274, 0.0004427343
    %v276 = vsel %vm275, %v273, %v270
    %v277 = vadd.f32 %v155, 1.0
    %v278 = vlog2.pop %v277
    %v279 = vmul.f32 %v278, 0.6931472
    %v280 = vmul.f32 -0.5, %v155
    %v281 = vadd.f32 %v280, 1.0
    %v282 = vmul.f32 %v281, %v155
    %v283 = vand.u32 2147483647, %v155
    %vm284 = vcmp.lt.f32.partialorder %v283, 0.0004427343
    %v285 = vsel %vm284, %v282, %v279
    %v286 = vadd.f32 %v157, 1.0
    %v287 = vlog2.pop %v286
    %v288 = vmul.f32 %v287, 0.6931472
    %v289 = vmul.f32 -0.5, %v157
    %v290 = vadd.f32 %v289, 1.0
    %v291 = vmul.f32 %v290, %v157
    %v292 = vand.u32 2147483647, %v157
    %vm293 = vcmp.lt.f32.partialorder %v292, 0.0004427343
    %v294 = vsel %vm293, %v291, %v288
    %v295 = vadd.f32 %v159, 1.0
    %v296 = vlog2.pop %v295
    %v297 = vmul.f32 %v296, 0.6931472
    %v298 = vmul.f32 -0.5, %v159
    %v299 = vadd.f32 %v298, 1.0
    %v300 = vmul.f32 %v299, %v159
    %v301 = vand.u32 2147483647, %v159
    %vm302 = vcmp.lt.f32.partialorder %v301, 0.0004427343
    %v303 = vsel %vm302, %v300, %v297
    %v304 = vadd.f32 %v80, %v168
    %v305 = vadd.f32 %v81, %v177
    %v306 = vadd.f32 %v82, %v186
    %v307 = vadd.f32 %v83, %v195
    %v308 = vadd.f32 %v84, %v204
    %v309 = vadd.f32 %v85, %v213
    %v310 = vadd.f32 %v86, %v222
    %v311 = vadd.f32 %v87, %v231
    %v312 = vadd.f32 %v88, %v240
    %v313 = vadd.f32 %v89, %v249
    %v314 = vadd.f32 %v90, %v258
    %v315 = vadd.f32 %v91, %v267
    %v316 = vadd.f32 %v92, %v276
    %v317 = vadd.f32 %v93, %v285
    %v318 = vadd.f32 %v94, %v294
    %v319 = vadd.f32 %v95, %v303
    %v320 = vmul.f32 %v304, %v304
    %v321 = vmul.f32 %v305, %v305
    %v322 = vmul.f32 %v306, %v306
    %v323 = vmul.f32 %v307, %v307
    %v324 = vmul.f32 %v308, %v308
    %v325 = vmul.f32 %v309, %v309
    %v326 = vmul.f32 %v310, %v310
    %v327 = vmul.f32 %v311, %v311
    %v328 = vmul.f32 %v312, %v312
    %v329 = vmul.f32 %v313, %v313
    %v330 = vmul.f32 %v314, %v314
    %v331 = vmul.f32 %v315, %v315
    %v332 = vmul.f32 %v316, %v316
    %v333 = vmul.f32 %v317, %v317
    %v334 = vmul.f32 %v318, %v318
    %v335 = vmul.f32 %v319, %v319
    %v336 = vld [vmem:[#allocation5] sm:$0xff]
    %v337 = vld [vmem:[#allocation5 + $0x8] sm:$0xff]
    %v338 = vld [vmem:[#allocation5 + $0x10] sm:$0xff]
    %v339 = vld [vmem:[#allocation5 + $0x18] sm:$0xff]
    %v340 = vld [vmem:[#allocation5 + $0x20] sm:$0xff]
    %v341 = vld [vmem:[#allocation5 + $0x28] sm:$0xff]
    %v342 = vld [vmem:[#allocation5 + $0x30] sm:$0xff]
    %v343 = vld [vmem:[#allocation5 + $0x38] sm:$0xff]
    %v344 = vld [vmem:[#allocation5 + $0x40] sm:$0xff]
    %v345 = vld [vmem:[#allocation5 + $0x48] sm:$0xff]
    %v346 = vld [vmem:[#allocation5 + $0x50] sm:$0xff]
    %v347 = vld [vmem:[#allocation5 + $0x58] sm:$0xff]
    %v348 = vld [vmem:[#allocation5 + $0x60] sm:$0xff]
    %v349 = vld [vmem:[#allocation5 + $0x68] sm:$0xff]
    %v350 = vld [vmem:[#allocation5 + $0x70] sm:$0xff]
    %v351 = vld [vmem:[#allocation5 + $0x78] sm:$0xff]
    %v352 = vmul.f32 %v63, %v63
    %v353 = vld [vmem:[%s4] sm:$0x1]
    %v354 = vmax.f32 %v353, 0.0
    %v355 = vand.u32 2147483647, %v353
    %v356 = vsub.f32 0.0, %v355
    %v357 = vmul.f32 %v356, 1.442695
    %v358 = vpow.pop %v357
    %v359 = vadd.f32 %v358, 1.0
    %v360 = vlog2.pop %v359
    %v361 = vmul.f32 %v360, 0.6931472
    %v362 = vmul.f32 -0.5, %v358
    %v363 = vadd.f32 %v362, 1.0
    %v364 = vmul.f32 %v363, %v358
    %v365 = vand.u32 2147483647, %v358
    %vm366 = vcmp.lt.f32.partialorder %v365, 0.0004427343
    %v367 = vsel %vm366, %v364, %v361
    %v368 = vadd.f32 %v354, %v367
    %v369 = vld [vmem:[%s3] sm:$0x1]
    %v371 = vlaneseq
    %v372 = vshrl.u32 %v371, 7
    %v373 = vsub.s32 0, %v372
    %v374 = vrot.slane %v369, %v373
    %376 = vmatprep.subr.mxu0 0.0
    %377 = vmatpush1.msra.mxu0 %v336
    %378 = vmatprep.subr.mxu0 0.0
    %379 = vmatpush1.msra.mxu0 %v337
    %380 = vmatprep.subr.mxu0 0.0
    %381 = vmatpush1.msra.mxu0 %v338
    %382 = vmatprep.subr.mxu0 0.0
    %383 = vmatpush1.msra.mxu0 %v339
    %384 = vmatprep.subr.mxu0 0.0
    %385 = vmatpush1.msra.mxu0 %v340
    %386 = vmatprep.subr.mxu0 0.0
    %387 = vmatpush1.msra.mxu0 %v341
    %388 = vmatprep.subr.mxu0 0.0
    %389 = vmatpush1.msra.mxu0 %v342
    %390 = vmatprep.subr.mxu0 0.0
    %391 = vmatpush1.msra.mxu0 %v343
    %392 = vmatprep.subr.mxu0 0.0
    %393 = vmatpush1.msra.mxu0 %v344
    %394 = vmatprep.subr.mxu0 0.0
    %395 = vmatpush1.msra.mxu0 %v345
    %396 = vmatprep.subr.mxu0 0.0
    %397 = vmatpush1.msra.mxu0 %v346
    %398 = vmatprep.subr.mxu0 0.0
    %399 = vmatpush1.msra.mxu0 %v347
    %400 = vmatprep.subr.mxu0 0.0
    %401 = vmatpush1.msra.mxu0 %v348
    %402 = vmatprep.subr.mxu0 0.0
    %403 = vmatpush1.msra.mxu0 %v349
    %404 = vmatprep.subr.mxu0 0.0
    %405 = vmatpush1.msra.mxu0 %v350
    %406 = vmatprep.subr.mxu0 0.0
    %407 = vmatpush1.msra.mxu0 %v351
    %408 = vmatprep.subr.mxu0 0.0
    %409 = vmatpush1.msra.mxu0 0.0
    %410 = vmatprep.subr.mxu0 0.0
    %411 = vmatpush1.msra.mxu0 0.0
    %412 = vmatprep.subr.mxu0 0.0
    %413 = vmatpush1.msra.mxu0 0.0
    %414 = vmatprep.subr.mxu0 0.0
    %415 = vmatpush1.msra.mxu0 0.0
    %416 = vmatprep.subr.mxu0 0.0
    %417 = vmatpush1.msra.mxu0 0.0
    %418 = vmatprep.subr.mxu0 0.0
    %419 = vmatpush1.msra.mxu0 0.0
    %420 = vmatprep.subr.mxu0 0.0
    %421 = vmatpush1.msra.mxu0 0.0
    %422 = vmatprep.subr.mxu0 0.0
    %423 = vmatpush1.msra.mxu0 0.0
    %424 = vmatprep.subr.mxu0 0.0
    %425 = vmatpush1.msra.mxu0 0.0
    %426 = vmatprep.subr.mxu0 0.0
    %427 = vmatpush1.msra.mxu0 0.0
    %428 = vmatprep.subr.mxu0 0.0
    %429 = vmatpush1.msra.mxu0 0.0
    %430 = vmatprep.subr.mxu0 0.0
    %431 = vmatpush1.msra.mxu0 0.0
    %432 = vmatprep.subr.mxu0 0.0
    %433 = vmatpush1.msra.mxu0 0.0
    %434 = vmatprep.subr.mxu0 0.0
    %435 = vmatpush1.msra.mxu0 0.0
    %436 = vmatprep.subr.mxu0 0.0
    %437 = vmatpush1.msra.mxu0 0.0
    %438 = vmatprep.subr.mxu0 0.0
    %439 = vmatpush1.msra.mxu0 0.0
    %440 = vmatprep.mubr.f32.mxu0 0.0
    %441 = vmatmul.mubr.f32.gmra.mrb[0].mxu0 %v63
    %v442 = vpop.f32.mrb[0].mxu0
    %v443 = vadd.f32 %v374, %v442
    %v444 = vpop.f32.mrb[0].mxu0
    %445 = vdwg.mxu0
    %v446 = vmul.f32 %v368, %v368
    %v448 = vlaneseq
    %v449 = vshrl.u32 %v448, 7
    %v450 = vsub.s32 0, %v449
    %v451 = vrot.slane %v446, %v450
    %453 = vmatprep.subr.mxu0 0.0
    %454 = vmatpush1.msra.mxu0 %v320
    %455 = vmatprep.subr.mxu0 0.0
    %456 = vmatpush1.msra.mxu0 %v321
    %457 = vmatprep.subr.mxu0 0.0
    %458 = vmatpush1.msra.mxu0 %v322
    %459 = vmatprep.subr.mxu0 0.0
    %460 = vmatpush1.msra.mxu0 %v323
    %461 = vmatprep.subr.mxu0 0.0
    %462 = vmatpush1.msra.mxu0 %v324
    %463 = vmatprep.subr.mxu0 0.0
    %464 = vmatpush1.msra.mxu0 %v325
    %465 = vmatprep.subr.mxu0 0.0
    %466 = vmatpush1.msra.mxu0 %v326
    %467 = vmatprep.subr.mxu0 0.0
    %468 = vmatpush1.msra.mxu0 %v327
    %469 = vmatprep.subr.mxu0 0.0
    %470 = vmatpush1.msra.mxu0 %v328
    %471 = vmatprep.subr.mxu0 0.0
    %472 = vmatpush1.msra.mxu0 %v329
    %473 = vmatprep.subr.mxu0 0.0
    %474 = vmatpush1.msra.mxu0 %v330
    %475 = vmatprep.subr.mxu0 0.0
    %476 = vmatpush1.msra.mxu0 %v331
    %477 = vmatprep.subr.mxu0 0.0
    %478 = vmatpush1.msra.mxu0 %v332
    %479 = vmatprep.subr.mxu0 0.0
    %480 = vmatpush1.msra.mxu0 %v333
    %481 = vmatprep.subr.mxu0 0.0
    %482 = vmatpush1.msra.mxu0 %v334
    %483 = vmatprep.subr.mxu0 0.0
    %484 = vmatpush1.msra.mxu0 %v335
    %485 = vmatprep.subr.mxu0 0.0
    %486 = vmatpush1.msra.mxu0 0.0
    %487 = vmatprep.subr.mxu0 0.0
    %488 = vmatpush1.msra.mxu0 0.0
    %489 = vmatprep.subr.mxu0 0.0
    %490 = vmatpush1.msra.mxu0 0.0
    %491 = vmatprep.subr.mxu0 0.0
    %492 = vmatpush1.msra.mxu0 0.0
    %493 = vmatprep.subr.mxu0 0.0
    %494 = vmatpush1.msra.mxu0 0.0
    %495 = vmatprep.subr.mxu0 0.0
    %496 = vmatpush1.msra.mxu0 0.0
    %497 = vmatprep.subr.mxu0 0.0
    %498 = vmatpush1.msra.mxu0 0.0
    %499 = vmatprep.subr.mxu0 0.0
    %500 = vmatpush1.msra.mxu0 0.0
    %501 = vmatprep.subr.mxu0 0.0
    %502 = vmatpush1.msra.mxu0 0.0
    %503 = vmatprep.subr.mxu0 0.0
    %504 = vmatpush1.msra.mxu0 0.0
    %505 = vmatprep.subr.mxu0 0.0
    %506 = vmatpush1.msra.mxu0 0.0
    %507 = vmatprep.subr.mxu0 0.0
    %508 = vmatpush1.msra.mxu0 0.0
    %509 = vmatprep.subr.mxu0 0.0
    %510 = vmatpush1.msra.mxu0 0.0
    %511 = vmatprep.subr.mxu0 0.0
    %512 = vmatpush1.msra.mxu0 0.0
    %513 = vmatprep.subr.mxu0 0.0
    %514 = vmatpush1.msra.mxu0 0.0
    %515 = vmatprep.subr.mxu0 0.0
    %516 = vmatpush1.msra.mxu0 0.0
    %517 = vmatprep.mubr.f32.mxu0 0.0
    %518 = vmatmul.mubr.f32.gmra.mrb[0].mxu0 %v352
    %v519 = vpop.f32.mrb[0].mxu0
    %v520 = vadd.f32 %v451, %v519
    %v521 = vpop.f32.mrb[0].mxu0
    %522 = vdwg.mxu0
    %v523 = vadd.f32 %v520, 1e-16
    %v524 = vrsqrt.pop %v523
    %v525 = vmul.f32 %v523, %v524
    %vm526 = vcmp.eq.f32.partialorder %v523, inf
    %v527 = vsel %vm526, %v523, %v525
    %vm528 = vcmp.eq.f32.partialorder %v523, 0.0
    %v529 = vand.u32 %v523, 2147483648
    %v530 = vsel %vm528, %v529, %v527
    %v531 = vld [vmem:[%s5] sm:$0xff]
    %v532 = vmul.f32 %v530, %v531
    %v533 = vadd.f32 %v443, %v532
    %534 = vst [vmem:[#allocation8] sm:$0xff] %v533
    // Predicated region
    $region38: #{tpu_custom_call.1} parent=1 // pred_check
      _
    $region39: #{tpu_custom_call.1} parent=1 // pred_check_branch
      %536 = sbr.rel (0) target = $region41
    $region40: #{tpu_custom_call.1} parent=1 // pred_region
      %s538 = ssub.s32 128, 128
      %539 = vsyncadd [#allocation4], %s538
      %s541 = sshll.u32 [#allocation8], 4
      %s542 = int_to_ptr.vmem [resolvable:$true] %s541
      %544 = dma.vmem_to_hbm [thread:$0]  %s542, 128, %s6, [#allocation4]
    $region41: #{tpu_custom_call.1} parent=1 // pred_fallthru
      _
    // Predicated region
    $region42: #{tpu_custom_call.1} parent=1 // pred_check
      _
    $region43: #{tpu_custom_call.1} parent=1 // pred_check_branch
      %546 = sbr.rel (0) target = $region45
    $region44: #{tpu_custom_call.1} parent=1 // pred_region
      %547 = dma.done [#allocation4], 128
    $region45: #{tpu_custom_call.1} parent=1 // pred_fallthru
      _
    %548 = vsyncpa [#allocation3], 1
    %549 = vsyncpa [#allocation6], 1
    %550 = vsyncpa [#allocation4], 1

</llo_original>
